<compile_context>
chip_gen: v6e
topology: v6e:2x2x1
jax: 0.10.0
libtpu: 0.0.40
codegen_flags: <defaults>
</compile_context>

<pallas_src>
import numpy as np
import jax
import jax.numpy as jnp
from jax.experimental import pallas as pl
from jax.experimental.pallas import tpu as pltpu

EPS = 1e-5


def _round_up(x, m):
    return ((x + m - 1) // m) * m


def _pick_tile(dim, base, max_tile):
    """Largest multiple of `base` (<= max_tile) that divides round_up(dim, base).

    Returns (tile, padded_dim) with padded_dim % tile == 0.
    """
    padded = _round_up(dim, base)
    best = base
    t = base
    while t <= max_tile:
        if padded % t == 0:
            best = t
        t += base
    return best, padded


def _head_kernel(x_ref, w_ref, b_ref, o_ref, acc_ref):
    """One (tm, te) output tile; grid axis 2 streams the K reduction."""
    k = pl.program_id(2)

    @pl.when(k == 0)
    def _():
        # Fused bias already contains the BN2d shift propagated through W,
        # the Linear bias and the BN1d affine shift.
        acc_ref[...] = jnp.broadcast_to(b_ref[...], acc_ref.shape)

    acc_ref[...] += jnp.dot(x_ref[...], w_ref[...],
                            preferred_element_type=jnp.float32)

    @pl.when(k == pl.num_programs(2) - 1)
    def _():
        o_ref[...] = acc_ref[...].astype(o_ref.dtype)


def prepare_params(raw, *, weight_dtype=jnp.float32, te_max=512, tk_max=1024):
    """One-time (offline) prep: fold BN2d + BN1d into the Linear weight/bias,
    transpose to (K, E), pad to lane-dense tile-divisible shapes, pick tiles."""
    C = raw["bn2_gamma"].shape[0]
    E, K = raw["lin_w"].shape
    HW = K // C

    # eval-mode BN2d, broadcast per flattened feature (NCHW flatten order:
    # each channel's H*W block is contiguous, matching torch.nn.Flatten).
    s2 = raw["bn2_gamma"] / jnp.sqrt(raw["bn2_var"] + EPS)          # (C,)
    b2 = raw["bn2_beta"] - raw["bn2_mean"] * s2                     # (C,)
    s2k = jnp.repeat(s2, HW)                                        # (K,)
    b2k = jnp.repeat(b2, HW)                                        # (K,)

    # eval-mode BN1d
    s1 = raw["bn1_gamma"] / jnp.sqrt(raw["bn1_var"] + EPS)          # (E,)
    sh1 = raw["bn1_beta"] - raw["bn1_mean"] * s1                    # (E,)

    w_t = raw["lin_w"].T                                            # (K, E)
    w_eff = (s2k[:, None] * w_t) * s1[None, :]                      # (K, E)
    b_eff = s1 * (b2k @ w_t + raw["lin_b"]) + sh1                   # (E,)

    # Tile sizes: multiples of 128 on E (lane-dense output) and K; padded dims
    # divide exactly by the chosen tiles so the grid is exact (no masking).
    te, E_pad = _pick_tile(E, 128, te_max)
    tk, K_pad = _pick_tile(K, 128, tk_max)

    w_eff = jnp.pad(w_eff, ((0, K_pad - K), (0, E_pad - E))).astype(weight_dtype)
    b_eff = jnp.pad(b_eff, (0, E_pad - E)).reshape(1, E_pad).astype(jnp.float32)

    return {"w_eff": w_eff, "b_eff": b_eff,
            "K": K, "E": E, "K_pad": K_pad, "E_pad": E_pad,
            "tk": tk, "te": te}


def head_forward(x_nchw, prep, *, tm_max=128):
    """x_nchw: (N, C, H, W). Returns (N, emb_size) float32."""
    N, C, H, W = x_nchw.shape
    K, E = prep["K"], prep["E"]
    assert C * H * W == K, "input feature size does not match prepared params"
    K_pad, E_pad = prep["K_pad"], prep["E_pad"]
    tk, te = prep["tk"], prep["te"]

    # Flatten exactly like torch.nn.Flatten (NCHW row-major); stream x in the
    # same dtype as the weight (bf16 halves HBM bytes; accumulation is f32).
    x2d = x_nchw.reshape(N, K).astype(prep["w_eff"].dtype)

    tm, N_pad = _pick_tile(N, 8, tm_max)
    if (N_pad, K_pad) != (N, K):
        x2d = jnp.pad(x2d, ((0, N_pad - N), (0, K_pad - K)))

    grid = (N_pad // tm, E_pad // te, K_pad // tk)   # K (reduction) last

    out = pl.pallas_call(
        _head_kernel,
        out_shape=jax.ShapeDtypeStruct((N_pad, E_pad), jnp.float32),
        grid_spec=pltpu.PrefetchScalarGridSpec(
            num_scalar_prefetch=0,
            grid=grid,
            in_specs=[
                pl.BlockSpec((tm, tk), lambda i, j, k: (i, k)),   # activations
                pl.BlockSpec((tk, te), lambda i, j, k: (k, j)),   # fused weight
                pl.BlockSpec((1, te), lambda i, j, k: (0, j)),    # fused bias
            ],
            out_specs=pl.BlockSpec((tm, te), lambda i, j, k: (i, j)),
            scratch_shapes=[pltpu.VMEM((tm, te), jnp.float32)],
        ),
        compiler_params=pltpu.CompilerParams(
            dimension_semantics=("parallel", "parallel", "arbitrary"),
            vmem_limit_bytes=32 * 1024 * 1024,
        ),
    )(x2d, prep["w_eff"], prep["b_eff"])

    return out[:N, :E]


def make_params(key, inplanes, feat_size, emb_size):
    """Torch-equivalent raw parameters.

    The module's init is gamma=1, beta=0, mean=0, var=1, lin_b=0 (a special
    case of eval-mode BN); we use non-trivial 'trained-like' values so the
    offline BN folding is genuinely exercised by the correctness check.
    """
    K = inplanes * feat_size * feat_size
    ks = jax.random.split(key, 10)
    std = float(np.sqrt(2.0 / (K + emb_size)))          # xavier_normal_
    w = jax.random.normal(ks[0], (emb_size, K), jnp.float32) * std
    return {
        # BatchNorm2d(inplanes)
        "bn2_gamma": 1.0 + 0.2 * jax.random.normal(ks[1], (inplanes,), jnp.float32),
        "bn2_beta": 0.1 * jax.random.normal(ks[2], (inplanes,), jnp.float32),
        "bn2_mean": 0.1 * jax.random.normal(ks[3], (inplanes,), jnp.float32),
        "bn2_var": 1.0 + 0.3 * jax.random.uniform(ks[4], (inplanes,), jnp.float32),
        # Linear(K, emb_size)
        "lin_w": w,                                                   # (E, K)
        "lin_b": 0.05 * jax.random.normal(ks[5], (emb_size,), jnp.float32),
        # BatchNorm1d(emb_size)
        "bn1_gamma": 1.0 + 0.2 * jax.random.normal(ks[6], (emb_size,), jnp.float32),
        "bn1_beta": 0.1 * jax.random.normal(ks[7], (emb_size,), jnp.float32),
        "bn1_mean": 0.1 * jax.random.normal(ks[8], (emb_size,), jnp.float32),
        "bn1_var": 1.0 + 0.3 * jax.random.uniform(ks[9], (emb_size,), jnp.float32),
    }


def reference_forward(x_nchw, raw):
    """Pure-JAX reference matching the PyTorch module in eval mode."""
    N, C, H, W = x_nchw.shape
    s2 = raw["bn2_gamma"] / jnp.sqrt(raw["bn2_var"] + EPS)
    xb = (x_nchw - raw["bn2_mean"][None, :, None, None]) * s2[None, :, None, None] \
         + raw["bn2_beta"][None, :, None, None]
    # Dropout(p=0.0) is the identity.
    flat = xb.reshape(N, -1)
    y = flat @ raw["lin_w"].T + raw["lin_b"][None, :]
    s1 = raw["bn1_gamma"] / jnp.sqrt(raw["bn1_var"] + EPS)
    return (y - raw["bn1_mean"][None, :]) * s1[None, :] + raw["bn1_beta"][None, :]


if __name__ == "__main__":
    # Small shapes consistent with the fc head: K = 16*4*4 = 256, E = 32.
    batch, inplanes, feat_size, emb_size = 8, 16, 4, 32

    key = jax.random.PRNGKey(0)
    k_x, k_p = jax.random.split(key)
    x = jax.random.normal(k_x, (batch, inplanes, feat_size, feat_size),
                          dtype=jnp.float32)
    raw = make_params(k_p, inplanes, feat_size, emb_size)
    ref = reference_forward(x, raw)

    # f32 weight path; small tile caps here force a multi-step K reduction
    # (grid = (1, 1, 2)) so the accumulator init/writeback logic is exercised.
    prep_f32 = prepare_params(raw, weight_dtype=jnp.float32,
                              te_max=128, tk_max=128)
    out = jax.block_until_ready(head_forward(x, prep_f32))
    np.testing.assert_allclose(np.asarray(out), np.asarray(ref),
                               rtol=1e-5, atol=1e-5)

    # bf16 weight/activation streaming path (production tile caps) — halves
    # the HBM weight stream; accumulation stays f32 in the MXU.
    prep_bf16 = prepare_params(raw, weight_dtype=jnp.bfloat16)
    out_bf16 = jax.block_until_ready(head_forward(x, prep_bf16))
    np.testing.assert_allclose(np.asarray(out_bf16), np.asarray(ref),
                               rtol=3e-2, atol=3e-2)

    print("KERNEL_OK")
</pallas_src>

<mosaic_0001>
module attributes {stable_mosaic.version = 11 : i64} {
  func.func @_head_kernel(%arg0: i32, %arg1: i32, %arg2: i32, %arg3: memref<8x128xf32, #tpu.memory_space<vmem>>, %arg4: memref<128x128xf32, #tpu.memory_space<vmem>>, %arg5: memref<1x128xf32, #tpu.memory_space<vmem>>, %arg6: memref<8x128xf32, #tpu.memory_space<vmem>>, %arg7: memref<8x128xf32, #tpu.memory_space<vmem>>) attributes {dimension_semantics = [#tpu.dimension_semantics<parallel>, #tpu.dimension_semantics<parallel>, #tpu.dimension_semantics<arbitrary>], iteration_bounds = array<i64: 1, 1, 2>, scalar_prefetch = 0 : i64, scratch_operands = 1 : i64, tpu.core_type = #tpu.core_type<tc>, window_params = [{transform_indices = @transform_0, window_bounds = array<i64: 8, 128>}, {transform_indices = @transform_1, window_bounds = array<i64: 128, 128>}, {transform_indices = @transform_2, window_bounds = array<i64: 1, 128>}, {transform_indices = @transform_3, window_bounds = array<i64: 8, 128>}]} {
    %c0_i32 = arith.constant 0 : i32
    %0 = arith.cmpi eq, %arg2, %c0_i32 : i32
    %1 = arith.extui %0 : i1 to i32
    %c0_i32_0 = arith.constant 0 : i32
    %2 = arith.cmpi ne, %1, %c0_i32_0 : i32
    scf.if %2 {
      %c0_9 = arith.constant 0 : index
      %c0_10 = arith.constant 0 : index
      %12 = vector.load %arg5[%c0_9, %c0_10] : memref<1x128xf32, #tpu.memory_space<vmem>>, vector<1x128xf32>
      %13 = vector.shape_cast %12 : vector<1x128xf32> to vector<1x128xf32>
      %14 = vector.broadcast %13 : vector<1x128xf32> to vector<8x128xf32>
      %c0_11 = arith.constant 0 : index
      %c0_12 = arith.constant 0 : index
      %15 = vector.load %arg7[%c0_11, %c0_12] : memref<8x128xf32, #tpu.memory_space<vmem>>, vector<8x128xf32>
      tpu.vector_store %arg7[%c0_11, %c0_12], %14 {strides = array<i32>} : memref<8x128xf32, #tpu.memory_space<vmem>>, vector<8x128xf32>,
    } else {
    }
    %c0 = arith.constant 0 : index
    %c0_1 = arith.constant 0 : index
    %3 = vector.load %arg7[%c0, %c0_1] : memref<8x128xf32, #tpu.memory_space<vmem>>, vector<8x128xf32>
    %c0_2 = arith.constant 0 : index
    %c0_3 = arith.constant 0 : index
    %4 = vector.load %arg3[%c0_2, %c0_3] : memref<8x128xf32, #tpu.memory_space<vmem>>, vector<8x128xf32>
    %c0_4 = arith.constant 0 : index
    %c0_5 = arith.constant 0 : index
    %5 = vector.load %arg4[%c0_4, %c0_5] : memref<128x128xf32, #tpu.memory_space<vmem>>, vector<128x128xf32>
    %cst = arith.constant dense<0.000000e+00> : vector<8x128xf32>
    %6 = tpu.matmul %4, %5, %cst {dimension_numbers = #tpu.dot_dimension_numbers<[1], [0], [0], [1], [0, 0, 1, 1], [], []>} : vector<8x128xf32>, vector<128x128xf32>, vector<8x128xf32> -> vector<8x128xf32>
    %7 = arith.addf %3, %6 : vector<8x128xf32>
    %c0_6 = arith.constant 0 : index
    %c0_7 = arith.constant 0 : index
    %8 = vector.load %arg7[%c0_6, %c0_7] : memref<8x128xf32, #tpu.memory_space<vmem>>, vector<8x128xf32>
    tpu.vector_store %arg7[%c0_6, %c0_7], %7 {strides = array<i32>} : memref<8x128xf32, #tpu.memory_space<vmem>>, vector<8x128xf32>,
    %c1_i32 = arith.constant 1 : i32
    %9 = arith.cmpi eq, %arg2, %c1_i32 : i32
    %10 = arith.extui %9 : i1 to i32
    %c0_i32_8 = arith.constant 0 : i32
    %11 = arith.cmpi ne, %10, %c0_i32_8 : i32
    scf.if %11 {
      %c0_9 = arith.constant 0 : index
      %c0_10 = arith.constant 0 : index
      %12 = vector.load %arg7[%c0_9, %c0_10] : memref<8x128xf32, #tpu.memory_space<vmem>>, vector<8x128xf32>
      %c0_11 = arith.constant 0 : index
      %c0_12 = arith.constant 0 : index
      %13 = vector.load %arg6[%c0_11, %c0_12] : memref<8x128xf32, #tpu.memory_space<vmem>>, vector<8x128xf32>
      tpu.vector_store %arg6[%c0_11, %c0_12], %12 {strides = array<i32>} : memref<8x128xf32, #tpu.memory_space<vmem>>, vector<8x128xf32>,
    } else {
    }
    return
  }
  func.func @transform_0(%arg0: i32, %arg1: i32, %arg2: i32) -> (i32, i32) {
    %c0_i32 = arith.constant 0 : i32
    return %arg0, %arg2 : i32, i32
  }
  func.func @transform_1(%arg0: i32, %arg1: i32, %arg2: i32) -> (i32, i32) {
    %c0_i32 = arith.constant 0 : i32
    return %arg2, %arg1 : i32, i32
  }
  func.func @transform_2(%arg0: i32, %arg1: i32, %arg2: i32) -> (i32, i32) {
    %c0_i32 = arith.constant 0 : i32
    %c0_i32_0 = arith.constant 0 : i32
    return %c0_i32, %arg1 : i32, i32
  }
  func.func @transform_3(%arg0: i32, %arg1: i32, %arg2: i32) -> (i32, i32) {
    %c0_i32 = arith.constant 0 : i32
    return %arg0, %arg1 : i32, i32
  }
}

</mosaic_0001>

<llo_original>
// kernel: tpu_custom_call.1
$region0: #{tpu_custom_call.1}
  #allocation0 [shape = 'u32[]', space=smem, size = 0x4, offset = 0x4, fixed_abs, tag = 'smem constant byte address 0x4 - core index']
  #allocation1 [shape = 'u32[144,128]{1,0:T(1,128)}', space=vmem, size = 0x12000, scoped, tag = 'internal scratch']
  #allocation2 [shape = 'f32[8,128]{1,0:T(8,128)}', space=vmem, size = 0x1000, scoped, tag = 'scratch operand']
  %s0 = inlined_call_operand.hbm [shape: f32[8,256], index: 0, kind: input, shape index: {}]
  %s1 = inlined_call_operand.hbm [shape: f32[256,128], index: 1, kind: input, shape index: {}]
  %s2 = inlined_call_operand.vmem [shape: f32[1,128], index: 2, kind: input, shape index: {}]
  %s3 = inlined_call_operand.hbm [shape: f32[8,128], index: 3, kind: output, shape index: {}]
  %s4 = sld [smem:[#allocation0]]
  $region61: #{tpu_custom_call.1} parent=0
    _
  %s6 = ssub.s32 1, %s4
  %s7 = scalar_select 0, %s6, %s4
  $region1: #{tpu_custom_call.1} parent=0
    #allocation3 [shape = 'u8[8192]{0}', space=vmem, size = 0x2000, scoped, tag = 'input window, operand 0']
    #allocation4 [shape = 's32[2]{0}', space=sflag, size = 0x8, scoped, tag = 'scoped memory for tpu_custom_call.1']
    #allocation5 [shape = 's32[2]{0}', space=sflag, size = 0x8, scoped, tag = 'scoped memory for tpu_custom_call.1']
    #allocation6 [shape = 'u8[131072]{0}', space=vmem, size = 0x20000, scoped, tag = 'input window, operand 1']
    #allocation7 [shape = 's32[2]{0}', space=sflag, size = 0x8, scoped, tag = 'scoped memory for tpu_custom_call.1']
    #allocation8 [shape = 'u8[4096]{0}', space=vmem, size = 0x1000, scoped, tag = 'output window, operand 0, single buffered']
    %8 = vsyncpa [#allocation4], 0
    %s9 = scalar_lea.sflag [#allocation4], 1
    %10 = vsyncpa %s9, 0
    %11 = vsyncpa [#allocation7], 0
    %s12 = scalar_lea.sflag [#allocation7], 1
    %13 = vsyncpa %s12, 0
    %14 = vsyncpa [#allocation5], 0
    loop: start=0, step=1, limit=4
    $region2: #{tpu_custom_call.1} parent=1 // loop_pre_header
      _
    $region3: #{tpu_custom_call.1} parent=1 // loop_header
      %s16 = sphi 0, %s20
      %p17 = scmp.ge.s32.totalorder %s16, 4
      %s23 = sphi 0, %s42
      %s24 = sphi 0, %s38
      %s25 = sphi 0, %s34
      %s26 = sphi 0, %s23
      %s27 = sphi 0, %s24
      %s28 = sphi 0, %s25
      %s29 = sphi 0, %s26
      %s30 = sphi 0, %s27
      %s31 = sphi 0, %s28
      %s47 = sphi 0, %s49
      %s50 = sphi 0, %s47
      %s51 = sphi 0, %s50
      %s67 = sphi 0, %s51
      %s75 = sphi 0, %s77
      %s78 = sphi 0, %s75
      %s79 = sphi 0, %s78
      %s95 = sphi 0, %s79
      %s101 = sphi 0, %s103
      %s104 = sphi 0, %s101
      %s105 = sphi 0, %s104
      %s121 = sphi 0, %s105
      %s129 = sphi 0, %s131
      %s132 = sphi 0, %s129
      %s133 = sphi 0, %s132
      %s149 = sphi 0, %s133
    $region4: #{tpu_custom_call.1} parent=1 // loop_header_branch
      %19 = sbr.rel (%p17) target = $region8
    $region5: #{tpu_custom_call.1} parent=1 // loop_body
      %s21 = ssub.s32 %s16, 1
      %s22 = ssub.s32 %s16, 2
      %s32 = sadd.s32 1, %s25
      %p33 = scmp.ge.s32.totalorder %s32, 2
      %s34 = scalar_select %p33, 0, %s32
      %s35 = sadd.s32 1, %s24
      %s36 = scalar_select %p33, %s35, %s24
      %p37 = scmp.ge.s32.totalorder %s36, 1
      %s38 = scalar_select %p37, 0, %s36
      %s39 = sadd.s32 1, %s23
      %s40 = scalar_select %p37, %s39, %s23
      %p41 = scmp.ge.s32.totalorder %s40, 1
      %s42 = scalar_select %p41, 0, %s40
      %s43 = ssub.s32 %s23, %s42
      %s44 = ssub.s32 %s25, %s34
      %s45 = sor.u32 %s43, %s44
      %p46 = scmp.eq.s32.totalorder %s45, 0
      %s48 = sadd.s32 %s47, 1
      %s49 = scalar_select %p46, %s47, %s48
      %p52 = pneg %p46
      %p53 = scmp.eq.s32.totalorder %s16, 1
      %p54 = por %p52, %p53
      %p55 = scmp.ne.s32.totalorder %s47, %s50
      %p56 = scmp.eq.s32.totalorder %s16, 0
      %p57 = por %p55, %p56
      %p58 = scmp.ne.s32.totalorder %s47, %s50
      %p59 = scmp.eq.s32.totalorder %s21, 1
      %p60 = por %p58, %p59
      %p61 = scmp.ne.s32.totalorder %s50, %s51
      %p62 = scmp.eq.s32.totalorder %s21, 0
      %p63 = por %p61, %p62
      %p64 = scmp.ne.s32.totalorder %s50, %s51
      %p65 = scmp.eq.s32.totalorder %s22, 1
      %p66 = por %p64, %p65
      %p68 = scmp.ne.s32.totalorder %s51, %s67
      %p69 = scmp.eq.s32.totalorder %s22, 0
      %p70 = por %p68, %p69
      %s71 = ssub.s32 %s25, %s34
      %s72 = ssub.s32 %s24, %s38
      %s73 = sor.u32 %s71, %s72
      %p74 = scmp.eq.s32.totalorder %s73, 0
      %s76 = sadd.s32 %s75, 1
      %s77 = scalar_select %p74, %s75, %s76
      %p80 = pneg %p74
      %p81 = scmp.eq.s32.totalorder %s16, 1
      %p82 = por %p80, %p81
      %p83 = scmp.ne.s32.totalorder %s75, %s78
      %p84 = scmp.eq.s32.totalorder %s16, 0
      %p85 = por %p83, %p84
      %p86 = scmp.ne.s32.totalorder %s75, %s78
      %p87 = scmp.eq.s32.totalorder %s21, 1
      %p88 = por %p86, %p87
      %p89 = scmp.ne.s32.totalorder %s78, %s79
      %p90 = scmp.eq.s32.totalorder %s21, 0
      %p91 = por %p89, %p90
      %p92 = scmp.ne.s32.totalorder %s78, %s79
      %p93 = scmp.eq.s32.totalorder %s22, 1
      %p94 = por %p92, %p93
      %p96 = scmp.ne.s32.totalorder %s79, %s95
      %p97 = scmp.eq.s32.totalorder %s22, 0
      %p98 = por %p96, %p97
      %s99 = ssub.s32 %s24, %s38
      %p100 = scmp.eq.s32.totalorder %s99, 0
      %s102 = sadd.s32 %s101, 1
      %s103 = scalar_select %p100, %s101, %s102
      %p106 = pneg %p100
      %p107 = scmp.eq.s32.totalorder %s16, 1
      %p108 = por %p106, %p107
      %p109 = scmp.ne.s32.totalorder %s101, %s104
      %p110 = scmp.eq.s32.totalorder %s16, 0
      %p111 = por %p109, %p110
      %p112 = scmp.ne.s32.totalorder %s101, %s104
      %p113 = scmp.eq.s32.totalorder %s21, 1
      %p114 = por %p112, %p113
      %p115 = scmp.ne.s32.totalorder %s104, %s105
      %p116 = scmp.eq.s32.totalorder %s21, 0
      %p117 = por %p115, %p116
      %p118 = scmp.ne.s32.totalorder %s104, %s105
      %p119 = scmp.eq.s32.totalorder %s22, 1
      %p120 = por %p118, %p119
      %p122 = scmp.ne.s32.totalorder %s105, %s121
      %p123 = scmp.eq.s32.totalorder %s22, 0
      %p124 = por %p122, %p123
      %s125 = ssub.s32 %s23, %s42
      %s126 = ssub.s32 %s24, %s38
      %s127 = sor.u32 %s125, %s126
      %p128 = scmp.eq.s32.totalorder %s127, 0
      %s130 = sadd.s32 %s129, 1
      %s131 = scalar_select %p128, %s129, %s130
      %p134 = pneg %p128
      %p135 = scmp.eq.s32.totalorder %s16, 1
      %p136 = por %p134, %p135
      %p137 = scmp.ne.s32.totalorder %s129, %s132
      %p138 = scmp.eq.s32.totalorder %s16, 0
      %p139 = por %p137, %p138
      %p140 = scmp.ne.s32.totalorder %s129, %s132
      %p141 = scmp.eq.s32.totalorder %s21, 1
      %p142 = por %p140, %p141
      %p143 = scmp.ne.s32.totalorder %s132, %s133
      %p144 = scmp.eq.s32.totalorder %s21, 0
      %p145 = por %p143, %p144
      %p146 = scmp.ne.s32.totalorder %s132, %s133
      %p147 = scmp.eq.s32.totalorder %s22, 1
      %p148 = por %p146, %p147
      %p150 = scmp.ne.s32.totalorder %s133, %s149
      %p151 = scmp.eq.s32.totalorder %s22, 0
      %p152 = por %p150, %p151
      %p153 = scmp.le.s32.totalorder 1, %s16
      %p154 = scmp.lt.s32.totalorder %s16, 3
      %p155 = pnand %p153, %p154
      %p156 = pneg %p155
      // Predicated region
      $region9: #{tpu_custom_call.1} parent=5 // pred_check
        _
      $region10: #{tpu_custom_call.1} parent=5 // pred_check_branch
        %158 = sbr.rel (%p155) target = $region12
      $region11: #{tpu_custom_call.1} parent=5 // pred_region
        %s159 = ssub.s32 %s16, 1
        // Predicated region
        $region13: #{tpu_custom_call.1} parent=11 // pred_check
          %p160 = pneg %p117
        $region14: #{tpu_custom_call.1} parent=11 // pred_check_branch
          %162 = sbr.rel (%p160) target = $region16
        $region15: #{tpu_custom_call.1} parent=11 // pred_region
          %p163 = scmp.lt.s32.totalorder %s27, 0
          %s164 = scalar_select %p163, %s27, 0
          %s165 = scalar_lea.vmem %s2, %s164
        $region16: #{tpu_custom_call.1} parent=11 // pred_fallthru
          _
      $region12: #{tpu_custom_call.1} parent=5 // pred_fallthru
        _
      %p166 = scmp.lt.s32.totalorder %s16, 2
      // Predicated region
      $region17: #{tpu_custom_call.1} parent=5 // pred_check
        %p167 = pneg %p166
      $region18: #{tpu_custom_call.1} parent=5 // pred_check_branch
        %169 = sbr.rel (%p167) target = $region20
      $region19: #{tpu_custom_call.1} parent=5 // pred_region
        // Predicated region
        $region21: #{tpu_custom_call.1} parent=19 // pred_check
          %p170 = pneg %p57
        $region22: #{tpu_custom_call.1} parent=19 // pred_check_branch
          %172 = sbr.rel (%p170) target = $region24
        $region23: #{tpu_custom_call.1} parent=19 // pred_region
          %s173 = sand.u32 %s47, 1
          %s174 = scalar_lea.sflag [#allocation4], %s173
          %s175 = sand.u32 %s47, 1
          %s176 = smul.addr %s175, 8
          %s177 = scalar_lea.vmem [#allocation3], %s176
          %s179 = ssub.s32 128, 128
          %180 = vsyncadd %s174, %s179
          %s181 = smul.addr %s23, 2
          %s182 = sadd.s32 %s25, %s181
          %s183 = smul.addr %s182, 128
          %s184 = scalar_lea.hbm %s0, %s183
          %s186 = sshll.u32 %s177, 4
          %s187 = int_to_ptr.vmem [resolvable:$true] %s186
          %189 = dma.hbm_to_vmem [thread:$0]  %s184, 128, %s187, %s174
        $region24: #{tpu_custom_call.1} parent=19 // pred_fallthru
          _
        // Predicated region
        $region25: #{tpu_custom_call.1} parent=19 // pred_check
          %p190 = pneg %p85
        $region26: #{tpu_custom_call.1} parent=19 // pred_check_branch
          %192 = sbr.rel (%p190) target = $region28
        $region27: #{tpu_custom_call.1} parent=19 // pred_region
          %s193 = sand.u32 %s75, 1
          %s194 = scalar_lea.sflag [#allocation7], %s193
          %s195 = sand.u32 %s75, 1
          %s196 = smul.addr %s195, 128
          %s197 = scalar_lea.vmem [#allocation6], %s196
          %s198 = smul.u32 16, %s25
          %s200 = ssub.s32 2048, 2048
          %201 = vsyncadd %s194, %s200
          %s202 = sadd.s32 %s24, %s198
          %s203 = smul.addr %s202, 128
          %s204 = scalar_lea.hbm %s1, %s203
          %s205 = sshll.u32 %s197, 4
          %s206 = int_to_ptr.vmem [resolvable:$true] %s205
          %211 = dma.hbm_to_vmem [thread:$0]  %s204, 2048, %s206, %s194, 128, 128, 8
        $region28: #{tpu_custom_call.1} parent=19 // pred_fallthru
          _
      $region20: #{tpu_custom_call.1} parent=5 // pred_fallthru
        _
      %p212 = scmp.le.s32.totalorder 1, %s16
      %p213 = scmp.lt.s32.totalorder %s16, 3
      %p214 = pnand %p212, %p213
      %p215 = pneg %p214
      // Predicated region
      $region29: #{tpu_custom_call.1} parent=5 // pred_check
        _
      $region30: #{tpu_custom_call.1} parent=5 // pred_check_branch
        %217 = sbr.rel (%p214) target = $region32
      $region31: #{tpu_custom_call.1} parent=5 // pred_region
        %s218 = ssub.s32 %s16, 1
        %s219 = sand.u32 %s50, 1
        %s220 = scalar_lea.sflag [#allocation4], %s219
        %s221 = sand.u32 %s50, 1
        %s222 = smul.addr %s221, 8
        %s223 = scalar_lea.vmem [#allocation3], %s222
        // Predicated region
        $region33: #{tpu_custom_call.1} parent=31 // pred_check
          %p224 = pneg %p63
        $region34: #{tpu_custom_call.1} parent=31 // pred_check_branch
          %226 = sbr.rel (%p224) target = $region36
        $region35: #{tpu_custom_call.1} parent=31 // pred_region
          %227 = dma.done %s220, 128
        $region36: #{tpu_custom_call.1} parent=31 // pred_fallthru
          _
        %s228 = sand.u32 %s78, 1
        %s229 = scalar_lea.sflag [#allocation7], %s228
        %s230 = sand.u32 %s78, 1
        %s231 = smul.addr %s230, 128
        %s232 = scalar_lea.vmem [#allocation6], %s231
        // Predicated region
        $region37: #{tpu_custom_call.1} parent=31 // pred_check
          %p233 = pneg %p91
        $region38: #{tpu_custom_call.1} parent=31 // pred_check_branch
          %235 = sbr.rel (%p233) target = $region40
        $region39: #{tpu_custom_call.1} parent=31 // pred_region
          %236 = dma.done %s229, 2048
        $region40: #{tpu_custom_call.1} parent=31 // pred_fallthru
          _
        %s237 = sand.u32 %s50, 1
        %s238 = scalar_lea.sflag [#allocation4], %s237
        %s239 = sand.u32 %s50, 1
        %s240 = smul.addr %s239, 8
        %s241 = scalar_lea.vmem [#allocation3], %s240
        %p242 = pneg %p63
        %p243 = pneg %p60
        %s244 = sand.u32 %s78, 1
        %s245 = scalar_lea.sflag [#allocation7], %s244
        %s246 = sand.u32 %s78, 1
        %s247 = smul.addr %s246, 128
        %s248 = scalar_lea.vmem [#allocation6], %s247
        %p249 = pneg %p91
        %p250 = pneg %p88
        %p251 = scmp.lt.s32.totalorder %s27, 0
        %s252 = scalar_select %p251, %s27, 0
        %s253 = scalar_lea.vmem %s2, %s252
        %p254 = pneg %p117
        %p255 = pneg %p114
        %p256 = pneg %p145
        %p257 = pneg %p142
        %s258 = smul.u32 16, %s28
        %p259 = scmp.lt.s32.totalorder %s27, 0
        %s260 = scalar_select %p259, %s27, 0
        %s261 = scalar_lea.vmem %s2, %s260
        %p262 = scmp.eq.s32.totalorder %s28, 0
        // Predicated region
        $region41: #{tpu_custom_call.1} parent=31 // pred_check
          %p263 = pneg %p262
        $region42: #{tpu_custom_call.1} parent=31 // pred_check_branch
          %265 = sbr.rel (%p263) target = $region44
        $region43: #{tpu_custom_call.1} parent=31 // pred_region
          %v266 = vld [vmem:[%s261] sm:$0x1]
          %v268 = vlaneseq
          %v269 = vshrl.u32 %v268, 7
          %v270 = vsub.s32 0, %v269
          %v271 = vrot.slane %v266, %v270
          %273 = vst [vmem:[#allocation2] sm:$0xff] %v271
        $region44: #{tpu_custom_call.1} parent=31 // pred_fallthru
          _
        %v274 = vld [vmem:[#allocation2] sm:$0xff]
        %v275 = vld [vmem:[%s223] sm:$0xff]
        %v276 = vld [vmem:[%s232] sm:$0xff]
        %v277 = vld [vmem:[%s232 + $0x8] sm:$0xff]
        %v278 = vld [vmem:[%s232 + $0x10] sm:$0xff]
        %v279 = vld [vmem:[%s232 + $0x18] sm:$0xff]
        %v280 = vld [vmem:[%s232 + $0x20] sm:$0xff]
        %v281 = vld [vmem:[%s232 + $0x28] sm:$0xff]
        %v282 = vld [vmem:[%s232 + $0x30] sm:$0xff]
        %v283 = vld [vmem:[%s232 + $0x38] sm:$0xff]
        %v284 = vld [vmem:[%s232 + $0x40] sm:$0xff]
        %v285 = vld [vmem:[%s232 + $0x48] sm:$0xff]
        %v286 = vld [vmem:[%s232 + $0x50] sm:$0xff]
        %v287 = vld [vmem:[%s232 + $0x58] sm:$0xff]
        %v288 = vld [vmem:[%s232 + $0x60] sm:$0xff]
        %v289 = vld [vmem:[%s232 + $0x68] sm:$0xff]
        %v290 = vld [vmem:[%s232 + $0x70] sm:$0xff]
        %v291 = vld [vmem:[%s232 + $0x78] sm:$0xff]
        %292 = vmatprep.subr.mxu0 0.0
        %293 = vmatpush1.msra.mxu0 %v291
        %294 = vmatprep.subr.mxu0 0.0
        %295 = vmatpush1.msra.mxu0 %v290
        %296 = vmatprep.subr.mxu0 0.0
        %297 = vmatpush1.msra.mxu0 %v289
        %298 = vmatprep.subr.mxu0 0.0
        %299 = vmatpush1.msra.mxu0 %v288
        %300 = vmatprep.subr.mxu0 0.0
        %301 = vmatpush1.msra.mxu0 %v287
        %302 = vmatprep.subr.mxu0 0.0
        %303 = vmatpush1.msra.mxu0 %v286
        %304 = vmatprep.subr.mxu0 0.0
        %305 = vmatpush1.msra.mxu0 %v285
        %306 = vmatprep.subr.mxu0 0.0
        %307 = vmatpush1.msra.mxu0 %v284
        %308 = vmatprep.subr.mxu0 0.0
        %309 = vmatpush1.msra.mxu0 %v283
        %310 = vmatprep.subr.mxu0 0.0
        %311 = vmatpush1.msra.mxu0 %v282
        %312 = vmatprep.subr.mxu0 0.0
        %313 = vmatpush1.msra.mxu0 %v281
        %314 = vmatprep.subr.mxu0 0.0
        %315 = vmatpush1.msra.mxu0 %v280
        %316 = vmatprep.subr.mxu0 0.0
        %317 = vmatpush1.msra.mxu0 %v279
        %318 = vmatprep.subr.mxu0 0.0
        %319 = vmatpush1.msra.mxu0 %v278
        %320 = vmatprep.subr.mxu0 0.0
        %321 = vmatpush1.msra.mxu0 %v277
        %322 = vmatprep.subr.mxu0 0.0
        %323 = vmatpush1.msra.mxu0 %v276
        %324 = vmatprep.subr.mxu0 0.0
        %325 = vmatpush2.msra.mxu0 0.0
        %326 = vmatprep.subr.mxu0 0.0
        %327 = vmatpush2.msra.mxu0 0.0
        %328 = vmatprep.subr.mxu0 0.0
        %329 = vmatpush2.msra.mxu0 0.0
        %330 = vmatprep.subr.mxu0 0.0
        %331 = vmatpush2.msra.mxu0 0.0
        %332 = vmatprep.subr.mxu0 0.0
        %333 = vmatpush2.msra.mxu0 0.0
        %334 = vmatprep.subr.mxu0 0.0
        %335 = vmatpush2.msra.mxu0 0.0
        %336 = vmatprep.subr.mxu0 0.0
        %337 = vmatpush2.msra.mxu0 0.0
        %338 = vmatprep.subr.mxu0 0.0
        %339 = vmatpush2.msra.mxu0 0.0
        %340 = vmatprep.subr.mxu0 0.0
        %341 = vmatpush2.msra.mxu0 0.0
        %342 = vmatprep.subr.mxu0 0.0
        %343 = vmatpush2.msra.mxu0 0.0
        %344 = vmatprep.subr.mxu0 0.0
        %345 = vmatpush2.msra.mxu0 0.0
        %346 = vmatprep.subr.mxu0 0.0
        %347 = vmatpush2.msra.mxu0 0.0
        %348 = vmatprep.subr.mxu0 0.0
        %349 = vmatpush2.msra.mxu0 0.0
        %350 = vmatprep.subr.mxu0 0.0
        %351 = vmatpush2.msra.mxu0 0.0
        %352 = vmatprep.subr.mxu0 0.0
        %353 = vmatpush2.msra.mxu0 0.0
        %354 = vmatprep.subr.mxu0 0.0
        %355 = vmatpush2.msra.mxu0 0.0
        %356 = vmatprep.mubr.f32.mxu0 0.0
        %357 = vmatmul.mubr.f32.gmra.mxu0 %v275
        %v358 = vpop.f32.mrf.mxu0
        %v359 = vadd.f32 0.0, %v358
        %v360 = vpop.f32.mrf.mxu0
        %361 = vdwg.mxu0
        %v362 = vadd.f32 %v274, %v359
        %363 = vst [vmem:[#allocation2] sm:$0xff] %v362
        %p364 = scmp.eq.s32.totalorder %s28, 1
        // Predicated region
        $region45: #{tpu_custom_call.1} parent=31 // pred_check
          %p365 = pneg %p364
        $region46: #{tpu_custom_call.1} parent=31 // pred_check_branch
          %367 = sbr.rel (%p365) target = $region48
        $region47: #{tpu_custom_call.1} parent=31 // pred_region
          %v368 = vld [vmem:[#allocation2] sm:$0xff]
          %369 = vst [vmem:[#allocation8] sm:$0xff] %v368
        $region48: #{tpu_custom_call.1} parent=31 // pred_fallthru
          _
        // Predicated region
        $region49: #{tpu_custom_call.1} parent=31 // pred_check
          %p370 = pneg %p142
        $region50: #{tpu_custom_call.1} parent=31 // pred_check_branch
          %372 = sbr.rel (%p370) target = $region52
        $region51: #{tpu_custom_call.1} parent=31 // pred_region
          %s374 = ssub.s32 128, 128
          %375 = vsyncadd [#allocation5], %s374
          %s376 = sadd.s32 %s27, %s26
          %s377 = smul.addr %s376, 128
          %s378 = scalar_lea.hbm %s3, %s377
          %s380 = sshll.u32 [#allocation8], 4
          %s381 = int_to_ptr.vmem [resolvable:$true] %s380
          %383 = dma.vmem_to_hbm [thread:$0]  %s381, 128, %s378, [#allocation5]
        $region52: #{tpu_custom_call.1} parent=31 // pred_fallthru
          _
        // Predicated region
        $region53: #{tpu_custom_call.1} parent=31 // pred_check
          %p384 = pneg %p142
        $region54: #{tpu_custom_call.1} parent=31 // pred_check_branch
          %386 = sbr.rel (%p384) target = $region56
        $region55: #{tpu_custom_call.1} parent=31 // pred_region
          %387 = dma.done [#allocation5], 128
        $region56: #{tpu_custom_call.1} parent=31 // pred_fallthru
          _
      $region32: #{tpu_custom_call.1} parent=5 // pred_fallthru
        _
      %p388 = scmp.le.s32.totalorder 2, %s16
      // Predicated region
      $region57: #{tpu_custom_call.1} parent=5 // pred_check
        %p389 = pneg %p388
      $region58: #{tpu_custom_call.1} parent=5 // pred_check_branch
        %391 = sbr.rel (%p389) target = $region60
      $region59: #{tpu_custom_call.1} parent=5 // pred_region
        %s392 = ssub.s32 %s16, 2
      $region60: #{tpu_custom_call.1} parent=5 // pred_fallthru
        _
    $region6: #{tpu_custom_call.1} parent=1 // loop_footer
      %s20 = sadd.s32 1, %s16
    $region7: #{tpu_custom_call.1} parent=1 // loop_footer_branch
      %15 = sbr.rel target = $region3
    $region8: #{tpu_custom_call.1} parent=1 // loop_exit
      _
    %393 = vsyncpa [#allocation4], 1
    %s394 = scalar_lea.sflag [#allocation4], 1
    %395 = vsyncpa %s394, 1
    %396 = vsyncpa [#allocation7], 1
    %s397 = scalar_lea.sflag [#allocation7], 1
    %398 = vsyncpa %s397, 1
    %399 = vsyncpa [#allocation5], 1
    %s400 = scalar_lea.sflag [#allocation5], 1
    %401 = vsyncpa %s400, 1

</llo_original>
